<compile_context>
chip_gen: v6e
topology: v6e:2x2x1
jax: 0.10.0
libtpu: 0.0.40
codegen_flags: <defaults>
</compile_context>

<pallas_src>
import jax
import jax.numpy as jnp
from jax.experimental import pallas as pl
from jax.experimental.pallas import tpu as pltpu


def melody_pooler_kernel(x_ref, w_ref, b_ref, o_ref, acc_ref):
    # x_ref: (TB, TS, H)  w_ref: (H, H) = W^T / S   b_ref: (1, H)
    # o_ref: (TB, H)      acc_ref: (TB, H) f32 scratch (persists across grid)
    s = pl.program_id(1)

    @pl.when(s == 0)
    def _():
        acc_ref[...] = jnp.zeros_like(acc_ref)

    # f32-accumulated sequence sum; no materialized f32 copy of the block.
    acc_ref[...] += jnp.sum(x_ref[...], axis=1, dtype=jnp.float32)

    @pl.when(s == pl.num_programs(1) - 1)
    def _():
        # Feed the MXU native-dtype operands (bf16 fast path when weights are
        # bf16); the 1/S scale is already folded into w_ref.
        pooled = acc_ref[...].astype(w_ref.dtype)
        out = jnp.dot(pooled, w_ref[...], preferred_element_type=jnp.float32)
        out = out + b_ref[...].astype(jnp.float32)
        o_ref[...] = out.astype(o_ref.dtype)


def _round_up(x, m):
    return ((x + m - 1) // m) * m


def melody_pooler(hidden_states, weight, bias, *, tb=None, ts=None,
                  vmem_limit_bytes=48 * 1024 * 1024):
    """hidden_states: (B, S, H); weight: (H_out, H_in) PyTorch layout; bias: (H,)."""
    B, S, H = hidden_states.shape
    dtype = hidden_states.dtype
    bytes_per_el = jnp.dtype(dtype).itemsize

    # Fold the 1/S mean scale into the transposed weight:
    #   mean(x) @ W^T + b == sum(x) @ (W^T / S) + b
    w_t = (weight.T * (1.0 / S)).astype(weight.dtype)   # (H_in, H_out)
    b2d = bias.reshape(1, H)

    # ---- tile selection -------------------------------------------------
    if tb is None:
        tb = min(_round_up(B, 8), 128)          # output block sublane-aligned
    if ts is None:
        # Target ~4 MiB per x block: big enough for good HBM roofline,
        # small enough that 2x buffering + weight fits v7x's 64 MiB VMEM.
        target_bytes = 4 * 1024 * 1024
        ts_guess = max(8, target_bytes // max(1, tb * H * bytes_per_el))
        ts_guess = max(8, (ts_guess // 8) * 8)
        ts = min(_round_up(S, 8), ts_guess)

    # Zero-pad B and S to tile multiples (zeros don't change the sum; padded
    # batch rows are sliced off at the end).
    Bp, Sp = _round_up(B, tb), _round_up(S, ts)
    if (Bp, Sp) != (B, S):
        hidden_states = jnp.pad(
            hidden_states, ((0, Bp - B), (0, Sp - S), (0, 0)))

    grid = (Bp // tb, Sp // ts)

    out = pl.pallas_call(
        melody_pooler_kernel,
        out_shape=jax.ShapeDtypeStruct((Bp, H), dtype),
        grid_spec=pltpu.PrefetchScalarGridSpec(
            num_scalar_prefetch=0,
            grid=grid,
            in_specs=[
                pl.BlockSpec((tb, ts, H), lambda b, s: (b, s, 0)),  # streamed
                pl.BlockSpec((H, H), lambda b, s: (0, 0)),          # resident
                pl.BlockSpec((1, H), lambda b, s: (0, 0)),          # resident
            ],
            out_specs=pl.BlockSpec((tb, H), lambda b, s: (b, 0)),
            scratch_shapes=[pltpu.VMEM((tb, H), jnp.float32)],
        ),
        compiler_params=pltpu.CompilerParams(
            dimension_semantics=("parallel", "arbitrary"),
            vmem_limit_bytes=vmem_limit_bytes,
        ),
    )(hidden_states, w_t, b2d)

    return out[:B]


if __name__ == "__main__":
    key = jax.random.PRNGKey(0)
    kx, kw, kb = jax.random.split(key, 3)

    # Small, module-consistent shapes (scaled-down hidden size).
    B, S, H = 4, 64, 256
    hidden_states = jax.random.normal(kx, (B, S, H), dtype=jnp.float32)

    # Deterministic synthetic Linear(H, H) params (PyTorch layout: (out, in)).
    bound = 1.0 / (H ** 0.5)
    weight = jax.random.uniform(kw, (H, H), dtype=jnp.float32,
                                minval=-bound, maxval=bound)
    bias = jax.random.uniform(kb, (H,), dtype=jnp.float32,
                              minval=-bound, maxval=bound)

    # Force a multi-step S reduction + B padding path to exercise the grid.
    out = melody_pooler(hidden_states, weight, bias, tb=8, ts=16)
    out = jax.block_until_ready(out)

    # Sanity-check against a pure-JAX reference.
    ref = jnp.mean(hidden_states, axis=1) @ weight.T + bias
    assert out.shape == (B, H)
    assert jnp.allclose(out, ref, atol=1e-4, rtol=1e-4)

    print("KERNEL_OK")
</pallas_src>

<mosaic_0001>
module attributes {stable_mosaic.version = 11 : i64} {
  func.func @melody_pooler_kernel(%arg0: i32, %arg1: i32, %arg2: memref<8x16x256xf32, #tpu.memory_space<vmem>>, %arg3: memref<256x256xf32, #tpu.memory_space<vmem>>, %arg4: memref<1x256xf32, #tpu.memory_space<vmem>>, %arg5: memref<8x256xf32, #tpu.memory_space<vmem>>, %arg6: memref<8x256xf32, #tpu.memory_space<vmem>>) attributes {dimension_semantics = [#tpu.dimension_semantics<parallel>, #tpu.dimension_semantics<arbitrary>], iteration_bounds = array<i64: 1, 4>, scalar_prefetch = 0 : i64, scratch_operands = 1 : i64, tpu.core_type = #tpu.core_type<tc>, window_params = [{transform_indices = @transform_0, window_bounds = array<i64: 8, 16, 256>}, {pipeline_mode = #tpu.pipeline_mode<synchronous>, transform_indices = @transform_1, window_bounds = array<i64: 256, 256>}, {pipeline_mode = #tpu.pipeline_mode<synchronous>, transform_indices = @transform_2, window_bounds = array<i64: 1, 256>}, {transform_indices = @transform_3, window_bounds = array<i64: 8, 256>}]} {
    %c0_i32 = arith.constant 0 : i32
    %0 = arith.cmpi eq, %arg1, %c0_i32 : i32
    %1 = arith.extui %0 : i1 to i32
    %c0_i32_0 = arith.constant 0 : i32
    %2 = arith.cmpi ne, %1, %c0_i32_0 : i32
    scf.if %2 {
      %cst_8 = arith.constant 0.000000e+00 : f32
      %11 = vector.broadcast %cst_8 : f32 to vector<8x256xf32>
      %c0_9 = arith.constant 0 : index
      %c0_10 = arith.constant 0 : index
      %12 = vector.load %arg6[%c0_9, %c0_10] : memref<8x256xf32, #tpu.memory_space<vmem>>, vector<8x256xf32>
      tpu.vector_store %arg6[%c0_9, %c0_10], %11 {strides = array<i32>} : memref<8x256xf32, #tpu.memory_space<vmem>>, vector<8x256xf32>,
    } else {
    }
    %c0 = arith.constant 0 : index
    %c0_1 = arith.constant 0 : index
    %3 = vector.load %arg6[%c0, %c0_1] : memref<8x256xf32, #tpu.memory_space<vmem>>, vector<8x256xf32>
    %c0_2 = arith.constant 0 : index
    %c0_3 = arith.constant 0 : index
    %c0_4 = arith.constant 0 : index
    %4 = vector.load %arg2[%c0_2, %c0_3, %c0_4] : memref<8x16x256xf32, #tpu.memory_space<vmem>>, vector<8x16x256xf32>
    %cst = arith.constant dense<0.000000e+00> : vector<8x256xf32>
    %5 = vector.multi_reduction <add>, %4, %cst [1] : vector<8x16x256xf32> to vector<8x256xf32>
    %6 = arith.addf %3, %5 : vector<8x256xf32>
    %c0_5 = arith.constant 0 : index
    %c0_6 = arith.constant 0 : index
    %7 = vector.load %arg6[%c0_5, %c0_6] : memref<8x256xf32, #tpu.memory_space<vmem>>, vector<8x256xf32>
    tpu.vector_store %arg6[%c0_5, %c0_6], %6 {strides = array<i32>} : memref<8x256xf32, #tpu.memory_space<vmem>>, vector<8x256xf32>,
    %c3_i32 = arith.constant 3 : i32
    %8 = arith.cmpi eq, %arg1, %c3_i32 : i32
    %9 = arith.extui %8 : i1 to i32
    %c0_i32_7 = arith.constant 0 : i32
    %10 = arith.cmpi ne, %9, %c0_i32_7 : i32
    scf.if %10 {
      %c0_8 = arith.constant 0 : index
      %c0_9 = arith.constant 0 : index
      %11 = vector.load %arg6[%c0_8, %c0_9] : memref<8x256xf32, #tpu.memory_space<vmem>>, vector<8x256xf32>
      %c0_10 = arith.constant 0 : index
      %c0_11 = arith.constant 0 : index
      %12 = vector.load %arg3[%c0_10, %c0_11] : memref<256x256xf32, #tpu.memory_space<vmem>>, vector<256x256xf32>
      %cst_12 = arith.constant dense<0.000000e+00> : vector<8x256xf32>
      %13 = tpu.matmul %11, %12, %cst_12 {dimension_numbers = #tpu.dot_dimension_numbers<[1], [0], [0], [1], [0, 0, 1, 1], [], []>} : vector<8x256xf32>, vector<256x256xf32>, vector<8x256xf32> -> vector<8x256xf32>
      %c0_13 = arith.constant 0 : index
      %c0_14 = arith.constant 0 : index
      %14 = vector.load %arg4[%c0_13, %c0_14] : memref<1x256xf32, #tpu.memory_space<vmem>>, vector<1x256xf32>
      %15 = vector.broadcast %14 : vector<1x256xf32> to vector<8x256xf32>
      %16 = arith.addf %13, %15 : vector<8x256xf32>
      %c0_15 = arith.constant 0 : index
      %c0_16 = arith.constant 0 : index
      %17 = vector.load %arg5[%c0_15, %c0_16] : memref<8x256xf32, #tpu.memory_space<vmem>>, vector<8x256xf32>
      tpu.vector_store %arg5[%c0_15, %c0_16], %16 {strides = array<i32>} : memref<8x256xf32, #tpu.memory_space<vmem>>, vector<8x256xf32>,
    } else {
    }
    return
  }
  func.func @transform_0(%arg0: i32, %arg1: i32) -> (i32, i32, i32) {
    %c0_i32 = arith.constant 0 : i32
    %c0_i32_0 = arith.constant 0 : i32
    return %arg0, %arg1, %c0_i32 : i32, i32, i32
  }
  func.func @transform_1(%arg0: i32, %arg1: i32) -> (i32, i32) {
    %c0_i32 = arith.constant 0 : i32
    %c0_i32_0 = arith.constant 0 : i32
    %c0_i32_1 = arith.constant 0 : i32
    return %c0_i32, %c0_i32_0 : i32, i32
  }
  func.func @transform_2(%arg0: i32, %arg1: i32) -> (i32, i32) {
    %c0_i32 = arith.constant 0 : i32
    %c0_i32_0 = arith.constant 0 : i32
    %c0_i32_1 = arith.constant 0 : i32
    return %c0_i32, %c0_i32_0 : i32, i32
  }
  func.func @transform_3(%arg0: i32, %arg1: i32) -> (i32, i32) {
    %c0_i32 = arith.constant 0 : i32
    %c0_i32_0 = arith.constant 0 : i32
    return %arg0, %c0_i32 : i32, i32
  }
}

</mosaic_0001>

<llo_original>
// kernel: tpu_custom_call.1
$region0: #{tpu_custom_call.1}
  #allocation0 [shape = 'u32[]', space=smem, size = 0x4, offset = 0x4, fixed_abs, tag = 'smem constant byte address 0x4 - core index']
  #allocation1 [shape = 'u32[144,128]{1,0:T(1,128)}', space=vmem, size = 0x12000, scoped, tag = 'internal scratch']
  #allocation2 [shape = 'f32[8,256]{1,0:T(8,128)}', space=vmem, size = 0x2000, scoped, tag = 'scratch operand']
  #allocation9 [shape = 's32[]', space=sflag, size = 0x4, offset = 0, fixed_abs, tag = 'sflag constant byte address 0x0 - dummy sync flag']
  %s0 = inlined_call_operand.hbm [shape: f32[8,64,256], index: 0, kind: input, shape index: {}]
  %s1 = inlined_call_operand.hbm [shape: f32[256,256], index: 1, kind: input, shape index: {}]
  %s2 = inlined_call_operand.vmem [shape: f32[1,256], index: 2, kind: input, shape index: {}]
  %s3 = inlined_call_operand.hbm [shape: f32[8,256], index: 3, kind: output, shape index: {}]
  %s4 = sld [smem:[#allocation0]]
  $region61: #{tpu_custom_call.1} parent=0
    _
  %s6 = ssub.s32 1, %s4
  %s7 = scalar_select 0, %s6, %s4
  $region1: #{tpu_custom_call.1} parent=0
    #allocation3 [shape = 'u8[262144]{0}', space=vmem, size = 0x40000, scoped, tag = 'input window, operand 0']
    #allocation4 [shape = 's32[2]{0}', space=sflag, size = 0x8, scoped, tag = 'scoped memory for tpu_custom_call.1']
    #allocation5 [shape = 's32[2]{0}', space=sflag, size = 0x8, scoped, tag = 'scoped memory for tpu_custom_call.1']
    #allocation6 [shape = 'u8[262144]{0}', space=vmem, size = 0x40000, scoped, tag = 'input window, operand 1, single buffered']
    #allocation7 [shape = 's32[1]{0}', space=sflag, size = 0x4, scoped, tag = 'scoped memory for tpu_custom_call.1']
    #allocation8 [shape = 'u8[8192]{0}', space=vmem, size = 0x2000, scoped, tag = 'output window, operand 0, single buffered']
    %8 = vsyncpa [#allocation4], 0
    %s9 = scalar_lea.sflag [#allocation4], 1
    %10 = vsyncpa %s9, 0
    %11 = vsyncpa [#allocation7], 0
    %12 = vsyncpa [#allocation5], 0
    loop: start=0, step=1, limit=6
    $region2: #{tpu_custom_call.1} parent=1 // loop_pre_header
      _
    $region3: #{tpu_custom_call.1} parent=1 // loop_header
      %s14 = sphi 0, %s18
      %p15 = scmp.ge.s32.totalorder %s14, 6
      %s21 = sphi 0, %s33
      %s22 = sphi 0, %s29
      %s23 = sphi 0, %s21
      %s24 = sphi 0, %s22
      %s25 = sphi 0, %s23
      %s26 = sphi 0, %s24
      %s38 = sphi 0, %s40
      %s41 = sphi 0, %s38
      %s42 = sphi 0, %s41
      %s58 = sphi 0, %s42
      %s62 = sphi 0, %s62
      %s64 = sphi 0, %s62
      %s65 = sphi 0, %s64
      %s79 = sphi 0, %s65
      %s83 = sphi 0, %s83
      %s85 = sphi 0, %s83
      %s86 = sphi 0, %s85
      %s100 = sphi 0, %s86
      %s106 = sphi 0, %s108
      %s109 = sphi 0, %s106
      %s110 = sphi 0, %s109
      %s126 = sphi 0, %s110
    $region4: #{tpu_custom_call.1} parent=1 // loop_header_branch
      %17 = sbr.rel (%p15) target = $region8
    $region5: #{tpu_custom_call.1} parent=1 // loop_body
      %s19 = ssub.s32 %s14, 1
      %s20 = ssub.s32 %s14, 2
      %s27 = sadd.s32 1, %s22
      %p28 = scmp.ge.s32.totalorder %s27, 4
      %s29 = scalar_select %p28, 0, %s27
      %s30 = sadd.s32 1, %s21
      %s31 = scalar_select %p28, %s30, %s21
      %p32 = scmp.ge.s32.totalorder %s31, 1
      %s33 = scalar_select %p32, 0, %s31
      %s34 = ssub.s32 %s21, %s33
      %s35 = ssub.s32 %s22, %s29
      %s36 = sor.u32 %s34, %s35
      %p37 = scmp.eq.s32.totalorder %s36, 0
      %s39 = sadd.s32 %s38, 1
      %s40 = scalar_select %p37, %s38, %s39
      %p43 = pneg %p37
      %p44 = scmp.eq.s32.totalorder %s14, 3
      %p45 = por %p43, %p44
      %p46 = scmp.ne.s32.totalorder %s38, %s41
      %p47 = scmp.eq.s32.totalorder %s14, 0
      %p48 = por %p46, %p47
      %p49 = scmp.ne.s32.totalorder %s38, %s41
      %p50 = scmp.eq.s32.totalorder %s19, 3
      %p51 = por %p49, %p50
      %p52 = scmp.ne.s32.totalorder %s41, %s42
      %p53 = scmp.eq.s32.totalorder %s19, 0
      %p54 = por %p52, %p53
      %p55 = scmp.ne.s32.totalorder %s41, %s42
      %p56 = scmp.eq.s32.totalorder %s20, 3
      %p57 = por %p55, %p56
      %p59 = scmp.ne.s32.totalorder %s42, %s58
      %p60 = scmp.eq.s32.totalorder %s20, 0
      %p61 = por %p59, %p60
      %s63 = sadd.s32 %s62, 1
      %p66 = scmp.eq.s32.totalorder %s14, 3
      %p67 = scmp.ne.s32.totalorder %s62, %s64
      %p68 = scmp.eq.s32.totalorder %s14, 0
      %p69 = por %p67, %p68
      %p70 = scmp.ne.s32.totalorder %s62, %s64
      %p71 = scmp.eq.s32.totalorder %s19, 3
      %p72 = por %p70, %p71
      %p73 = scmp.ne.s32.totalorder %s64, %s65
      %p74 = scmp.eq.s32.totalorder %s19, 0
      %p75 = por %p73, %p74
      %p76 = scmp.ne.s32.totalorder %s64, %s65
      %p77 = scmp.eq.s32.totalorder %s20, 3
      %p78 = por %p76, %p77
      %p80 = scmp.ne.s32.totalorder %s65, %s79
      %p81 = scmp.eq.s32.totalorder %s20, 0
      %p82 = por %p80, %p81
      %s84 = sadd.s32 %s83, 1
      %p87 = scmp.eq.s32.totalorder %s14, 3
      %p88 = scmp.ne.s32.totalorder %s83, %s85
      %p89 = scmp.eq.s32.totalorder %s14, 0
      %p90 = por %p88, %p89
      %p91 = scmp.ne.s32.totalorder %s83, %s85
      %p92 = scmp.eq.s32.totalorder %s19, 3
      %p93 = por %p91, %p92
      %p94 = scmp.ne.s32.totalorder %s85, %s86
      %p95 = scmp.eq.s32.totalorder %s19, 0
      %p96 = por %p94, %p95
      %p97 = scmp.ne.s32.totalorder %s85, %s86
      %p98 = scmp.eq.s32.totalorder %s20, 3
      %p99 = por %p97, %p98
      %p101 = scmp.ne.s32.totalorder %s86, %s100
      %p102 = scmp.eq.s32.totalorder %s20, 0
      %p103 = por %p101, %p102
      %s104 = ssub.s32 %s21, %s33
      %p105 = scmp.eq.s32.totalorder %s104, 0
      %s107 = sadd.s32 %s106, 1
      %s108 = scalar_select %p105, %s106, %s107
      %p111 = pneg %p105
      %p112 = scmp.eq.s32.totalorder %s14, 3
      %p113 = por %p111, %p112
      %p114 = scmp.ne.s32.totalorder %s106, %s109
      %p115 = scmp.eq.s32.totalorder %s14, 0
      %p116 = por %p114, %p115
      %p117 = scmp.ne.s32.totalorder %s106, %s109
      %p118 = scmp.eq.s32.totalorder %s19, 3
      %p119 = por %p117, %p118
      %p120 = scmp.ne.s32.totalorder %s109, %s110
      %p121 = scmp.eq.s32.totalorder %s19, 0
      %p122 = por %p120, %p121
      %p123 = scmp.ne.s32.totalorder %s109, %s110
      %p124 = scmp.eq.s32.totalorder %s20, 3
      %p125 = por %p123, %p124
      %p127 = scmp.ne.s32.totalorder %s110, %s126
      %p128 = scmp.eq.s32.totalorder %s20, 0
      %p129 = por %p127, %p128
      %p130 = scmp.le.s32.totalorder 1, %s14
      %p131 = scmp.lt.s32.totalorder %s14, 5
      %p132 = pnand %p130, %p131
      %p133 = pneg %p132
      // Predicated region
      $region9: #{tpu_custom_call.1} parent=5 // pred_check
        _
      $region10: #{tpu_custom_call.1} parent=5 // pred_check_branch
        %135 = sbr.rel (%p132) target = $region12
      $region11: #{tpu_custom_call.1} parent=5 // pred_region
        %s136 = ssub.s32 %s14, 1
        // Predicated region
        $region13: #{tpu_custom_call.1} parent=11 // pred_check
          %p137 = pneg %p75
        $region14: #{tpu_custom_call.1} parent=11 // pred_check_branch
          %139 = sbr.rel (%p137) target = $region16
        $region15: #{tpu_custom_call.1} parent=11 // pred_region
          %s141 = ssub.s32 8192, 8192
          %142 = vsyncadd [#allocation7], %s141
          %s143 = sshll.u32 [#allocation6], 4
          %s144 = int_to_ptr.vmem [resolvable:$true] %s143
          %149 = dma.hbm_to_vmem [thread:$0]  %s1, 8192, %s144, [#allocation7], 256, 256, 16
        $region16: #{tpu_custom_call.1} parent=11 // pred_fallthru
          _
        // Predicated region
        $region17: #{tpu_custom_call.1} parent=11 // pred_check
          %p150 = pneg %p96
        $region18: #{tpu_custom_call.1} parent=11 // pred_check_branch
          %152 = sbr.rel (%p150) target = $region20
        $region19: #{tpu_custom_call.1} parent=11 // pred_region
          _
        $region20: #{tpu_custom_call.1} parent=11 // pred_fallthru
          _
      $region12: #{tpu_custom_call.1} parent=5 // pred_fallthru
        _
      %p153 = scmp.lt.s32.totalorder %s14, 4
      // Predicated region
      $region21: #{tpu_custom_call.1} parent=5 // pred_check
        %p154 = pneg %p153
      $region22: #{tpu_custom_call.1} parent=5 // pred_check_branch
        %156 = sbr.rel (%p154) target = $region24
      $region23: #{tpu_custom_call.1} parent=5 // pred_region
        // Predicated region
        $region25: #{tpu_custom_call.1} parent=23 // pred_check
          %p157 = pneg %p48
        $region26: #{tpu_custom_call.1} parent=23 // pred_check_branch
          %159 = sbr.rel (%p157) target = $region28
        $region27: #{tpu_custom_call.1} parent=23 // pred_region
          #allocation10 [shape = 'u32[6]{0}', space=smem, size = 0x18, scoped, tag = 'DMA stride descriptor']
          %s160 = sand.u32 %s38, 1
          %s161 = scalar_lea.sflag [#allocation4], %s160
          %s162 = sand.u32 %s38, 1
          %s163 = smul.addr %s162, 256
          %s164 = scalar_lea.vmem [#allocation3], %s163
          %s165 = smul.u32 8, %s21
          %s166 = smul.u32 2, %s22
          %s168 = ssub.s32 4096, 4096
          %169 = vsyncadd %s161, %s168
          %s170 = smul.addr %s166, 2
          %s171 = smul.addr %s165, 16
          %s172 = sadd.s32 %s170, %s171
          %s173 = smul.addr %s172, 128
          %s174 = scalar_lea.hbm %s0, %s173
          %s176 = sshll.u32 1, 14
          %s177 = sxor.u32 4294967295, %s176
          %s179 = sld [smem:[#allocation0]]
          %s180 = sadd.s32 2, %s179
          %s182 = sshll.u32 7, 26
          %s183 = sxor.u32 4294967295, %s182
          %s184 = sand.u32 0, %s183
          %s185 = sshll.u32 %s180, 26
          %s186 = sor.u32 %s184, %s185
          %s187 = sshll.u32 %s164, 4
          %s188 = int_to_ptr.vmem [resolvable:$true] %s187
          %194 = sst [smem:[#allocation10]] 2048
          %s195 = scalar_lea.smem [#allocation10], 1
          %196 = sst [smem:[%s195]] 512
          %s197 = scalar_lea.smem [#allocation10], 2
          %198 = sst [smem:[%s197]] 2
          %s199 = scalar_lea.smem [#allocation10], 3
          %200 = sst [smem:[%s199]] 256
          %s201 = scalar_lea.smem [#allocation10], 4
          %202 = sst [smem:[%s201]] 256
          %s203 = scalar_lea.smem [#allocation10], 5
          %204 = sst [smem:[%s203]] 16
          %206 = dma.general %s174, 4096, %s188, %s161, 131072, [#allocation10], %s186, 0
        $region28: #{tpu_custom_call.1} parent=23 // pred_fallthru
          _
      $region24: #{tpu_custom_call.1} parent=5 // pred_fallthru
        _
      %p207 = scmp.le.s32.totalorder 1, %s14
      %p208 = scmp.lt.s32.totalorder %s14, 5
      %p209 = pnand %p207, %p208
      %p210 = pneg %p209
      // Predicated region
      $region29: #{tpu_custom_call.1} parent=5 // pred_check
        _
      $region30: #{tpu_custom_call.1} parent=5 // pred_check_branch
        %212 = sbr.rel (%p209) target = $region32
      $region31: #{tpu_custom_call.1} parent=5 // pred_region
        %s213 = ssub.s32 %s14, 1
        %s214 = sand.u32 %s41, 1
        %s215 = scalar_lea.sflag [#allocation4], %s214
        %s216 = sand.u32 %s41, 1
        %s217 = smul.addr %s216, 256
        %s218 = scalar_lea.vmem [#allocation3], %s217
        // Predicated region
        $region33: #{tpu_custom_call.1} parent=31 // pred_check
          %p219 = pneg %p54
        $region34: #{tpu_custom_call.1} parent=31 // pred_check_branch
          %221 = sbr.rel (%p219) target = $region36
        $region35: #{tpu_custom_call.1} parent=31 // pred_region
          %222 = dma.done %s215, 4096
        $region36: #{tpu_custom_call.1} parent=31 // pred_fallthru
          _
        // Predicated region
        $region37: #{tpu_custom_call.1} parent=31 // pred_check
          %p223 = pneg %p75
        $region38: #{tpu_custom_call.1} parent=31 // pred_check_branch
          %225 = sbr.rel (%p223) target = $region40
        $region39: #{tpu_custom_call.1} parent=31 // pred_region
          %226 = dma.done [#allocation7], 8192
        $region40: #{tpu_custom_call.1} parent=31 // pred_fallthru
          _
        %s227 = sand.u32 %s41, 1
        %s228 = scalar_lea.sflag [#allocation4], %s227
        %s229 = sand.u32 %s41, 1
        %s230 = smul.addr %s229, 256
        %s231 = scalar_lea.vmem [#allocation3], %s230
        %p232 = pneg %p54
        %p233 = pneg %p51
        %p234 = pneg %p75
        %p235 = pneg %p72
        %p236 = pneg %p96
        %p237 = pneg %p93
        %p238 = pneg %p122
        %p239 = pneg %p119
        %s240 = smul.u32 8, %s23
        %s241 = smul.u32 2, %s24
        %p242 = scmp.eq.s32.totalorder %s24, 0
        // Predicated region
        $region41: #{tpu_custom_call.1} parent=31 // pred_check
          %p243 = pneg %p242
        $region42: #{tpu_custom_call.1} parent=31 // pred_check_branch
          %245 = sbr.rel (%p243) target = $region44
        $region43: #{tpu_custom_call.1} parent=31 // pred_region
          %246 = vst [vmem:[#allocation2] sm:$0xff] 0.0
          %247 = vst [vmem:[#allocation2 + $0x8] sm:$0xff] 0.0
        $region44: #{tpu_custom_call.1} parent=31 // pred_fallthru
          _
        %v248 = vld [vmem:[#allocation2] sm:$0xff]
        %v249 = vld [vmem:[#allocation2 + $0x8] sm:$0xff]
        %v250 = vld [vmem:[%s218] sm:$0xff]
        %v251 = vld [vmem:[%s218 + $0x8] sm:$0xff]
        %v252 = vld [vmem:[%s218 + $0x10] sm:$0xff]
        %v253 = vld [vmem:[%s218 + $0x18] sm:$0xff]
        %v254 = vld [vmem:[%s218 + $0x20] sm:$0xff]
        %v255 = vld [vmem:[%s218 + $0x28] sm:$0xff]
        %v256 = vld [vmem:[%s218 + $0x30] sm:$0xff]
        %v257 = vld [vmem:[%s218 + $0x38] sm:$0xff]
        %v258 = vld [vmem:[%s218 + $0x40] sm:$0xff]
        %v259 = vld [vmem:[%s218 + $0x48] sm:$0xff]
        %v260 = vld [vmem:[%s218 + $0x50] sm:$0xff]
        %v261 = vld [vmem:[%s218 + $0x58] sm:$0xff]
        %v262 = vld [vmem:[%s218 + $0x60] sm:$0xff]
        %v263 = vld [vmem:[%s218 + $0x68] sm:$0xff]
        %v264 = vld [vmem:[%s218 + $0x70] sm:$0xff]
        %v265 = vld [vmem:[%s218 + $0x78] sm:$0xff]
        %v266 = vld [vmem:[%s218 + $0x80] sm:$0xff]
        %v267 = vld [vmem:[%s218 + $0x88] sm:$0xff]
        %v268 = vld [vmem:[%s218 + $0x90] sm:$0xff]
        %v269 = vld [vmem:[%s218 + $0x98] sm:$0xff]
        %v270 = vld [vmem:[%s218 + $0xa0] sm:$0xff]
        %v271 = vld [vmem:[%s218 + $0xa8] sm:$0xff]
        %v272 = vld [vmem:[%s218 + $0xb0] sm:$0xff]
        %v273 = vld [vmem:[%s218 + $0xb8] sm:$0xff]
        %v274 = vld [vmem:[%s218 + $0xc0] sm:$0xff]
        %v275 = vld [vmem:[%s218 + $0xc8] sm:$0xff]
        %v276 = vld [vmem:[%s218 + $0xd0] sm:$0xff]
        %v277 = vld [vmem:[%s218 + $0xd8] sm:$0xff]
        %v278 = vld [vmem:[%s218 + $0xe0] sm:$0xff]
        %v279 = vld [vmem:[%s218 + $0xe8] sm:$0xff]
        %v280 = vld [vmem:[%s218 + $0xf0] sm:$0xff]
        %v281 = vld [vmem:[%s218 + $0xf8] sm:$0xff]
        %v282 = vadd.f32 %v250, %v252
        %v283 = vrot.slane %v282, 4
        %v284 = vadd.f32 %v282, %v283
        %v285 = vrot.slane %v284, 2
        %v286 = vadd.f32 %v284, %v285
        %v287 = vrot.slane %v286, 1
        %v288 = vadd.f32 %v286, %v287
        %v289 = vadd.f32 %v251, %v253
        %v290 = vrot.slane %v289, 4
        %v291 = vadd.f32 %v289, %v290
        %v292 = vrot.slane %v291, 2
        %v293 = vadd.f32 %v291, %v292
        %v294 = vrot.slane %v293, 1
        %v295 = vadd.f32 %v293, %v294
        %v296 = vadd.f32 %v254, %v256
        %v297 = vrot.slane %v296, 4
        %v298 = vadd.f32 %v296, %v297
        %v299 = vrot.slane %v298, 2
        %v300 = vadd.f32 %v298, %v299
        %v301 = vrot.slane %v300, 1
        %v302 = vadd.f32 %v300, %v301
        %v303 = vadd.f32 %v255, %v257
        %v304 = vrot.slane %v303, 4
        %v305 = vadd.f32 %v303, %v304
        %v306 = vrot.slane %v305, 2
        %v307 = vadd.f32 %v305, %v306
        %v308 = vrot.slane %v307, 1
        %v309 = vadd.f32 %v307, %v308
        %v310 = vadd.f32 %v258, %v260
        %v311 = vrot.slane %v310, 4
        %v312 = vadd.f32 %v310, %v311
        %v313 = vrot.slane %v312, 2
        %v314 = vadd.f32 %v312, %v313
        %v315 = vrot.slane %v314, 1
        %v316 = vadd.f32 %v314, %v315
        %v317 = vadd.f32 %v259, %v261
        %v318 = vrot.slane %v317, 4
        %v319 = vadd.f32 %v317, %v318
        %v320 = vrot.slane %v319, 2
        %v321 = vadd.f32 %v319, %v320
        %v322 = vrot.slane %v321, 1
        %v323 = vadd.f32 %v321, %v322
        %v324 = vadd.f32 %v262, %v264
        %v325 = vrot.slane %v324, 4
        %v326 = vadd.f32 %v324, %v325
        %v327 = vrot.slane %v326, 2
        %v328 = vadd.f32 %v326, %v327
        %v329 = vrot.slane %v328, 1
        %v330 = vadd.f32 %v328, %v329
        %v331 = vadd.f32 %v263, %v265
        %v332 = vrot.slane %v331, 4
        %v333 = vadd.f32 %v331, %v332
        %v334 = vrot.slane %v333, 2
        %v335 = vadd.f32 %v333, %v334
        %v336 = vrot.slane %v335, 1
        %v337 = vadd.f32 %v335, %v336
        %v338 = vadd.f32 %v266, %v268
        %v339 = vrot.slane %v338, 4
        %v340 = vadd.f32 %v338, %v339
        %v341 = vrot.slane %v340, 2
        %v342 = vadd.f32 %v340, %v341
        %v343 = vrot.slane %v342, 1
        %v344 = vadd.f32 %v342, %v343
        %v345 = vadd.f32 %v267, %v269
        %v346 = vrot.slane %v345, 4
        %v347 = vadd.f32 %v345, %v346
        %v348 = vrot.slane %v347, 2
        %v349 = vadd.f32 %v347, %v348
        %v350 = vrot.slane %v349, 1
        %v351 = vadd.f32 %v349, %v350
        %v352 = vadd.f32 %v270, %v272
        %v353 = vrot.slane %v352, 4
        %v354 = vadd.f32 %v352, %v353
        %v355 = vrot.slane %v354, 2
        %v356 = vadd.f32 %v354, %v355
        %v357 = vrot.slane %v356, 1
        %v358 = vadd.f32 %v356, %v357
        %v359 = vadd.f32 %v271, %v273
        %v360 = vrot.slane %v359, 4
        %v361 = vadd.f32 %v359, %v360
        %v362 = vrot.slane %v361, 2
        %v363 = vadd.f32 %v361, %v362
        %v364 = vrot.slane %v363, 1
        %v365 = vadd.f32 %v363, %v364
        %v366 = vadd.f32 %v274, %v276
        %v367 = vrot.slane %v366, 4
        %v368 = vadd.f32 %v366, %v367
        %v369 = vrot.slane %v368, 2
        %v370 = vadd.f32 %v368, %v369
        %v371 = vrot.slane %v370, 1
        %v372 = vadd.f32 %v370, %v371
        %v373 = vadd.f32 %v275, %v277
        %v374 = vrot.slane %v373, 4
        %v375 = vadd.f32 %v373, %v374
        %v376 = vrot.slane %v375, 2
        %v377 = vadd.f32 %v375, %v376
        %v378 = vrot.slane %v377, 1
        %v379 = vadd.f32 %v377, %v378
        %v380 = vadd.f32 %v278, %v280
        %v381 = vrot.slane %v380, 4
        %v382 = vadd.f32 %v380, %v381
        %v383 = vrot.slane %v382, 2
        %v384 = vadd.f32 %v382, %v383
        %v385 = vrot.slane %v384, 1
        %v386 = vadd.f32 %v384, %v385
        %v387 = vadd.f32 %v279, %v281
        %v388 = vrot.slane %v387, 4
        %v389 = vadd.f32 %v387, %v388
        %v390 = vrot.slane %v389, 2
        %v391 = vadd.f32 %v389, %v390
        %v392 = vrot.slane %v391, 1
        %v393 = vadd.f32 %v391, %v392
        %vm410 = vcmask 1041409
        %v411 = vsel %vm410, %v302, %v288
        %vm412 = vcmask 1042434
        %v413 = vsel %vm412, %v316, %v411
        %vm414 = vcmask 1043459
        %v415 = vsel %vm414, %v330, %v413
        %vm416 = vcmask 1044484
        %v417 = vsel %vm416, %v344, %v415
        %vm418 = vcmask 1045509
        %v419 = vsel %vm418, %v358, %v417
        %vm420 = vcmask 1046534
        %v421 = vsel %vm420, %v372, %v419
        %vm422 = vcmask 1047559
        %v423 = vsel %vm422, %v386, %v421
        %v424 = vsel %vm410, %v309, %v295
        %v425 = vsel %vm412, %v323, %v424
        %v426 = vsel %vm414, %v337, %v425
        %v427 = vsel %vm416, %v351, %v426
        %v428 = vsel %vm418, %v365, %v427
        %v429 = vsel %vm420, %v379, %v428
        %v430 = vsel %vm422, %v393, %v429
        %v433 = vadd.f32 %v248, %v423
        %v434 = vadd.f32 %v249, %v430
        %435 = vst [vmem:[#allocation2] sm:$0xff] %v433
        %436 = vst [vmem:[#allocation2 + $0x8] sm:$0xff] %v434
        %p437 = scmp.eq.s32.totalorder %s24, 3
        // Predicated region
        $region45: #{tpu_custom_call.1} parent=31 // pred_check
          %p438 = pneg %p437
        $region46: #{tpu_custom_call.1} parent=31 // pred_check_branch
          %440 = sbr.rel (%p438) target = $region48
        $region47: #{tpu_custom_call.1} parent=31 // pred_region
          %v441 = vld [vmem:[#allocation2] sm:$0xff]
          %v442 = vld [vmem:[#allocation2 + $0x8] sm:$0xff]
          %v443 = vld [vmem:[#allocation6] sm:$0xff]
          %v444 = vld [vmem:[#allocation6 + $0x8] sm:$0xff]
          %v445 = vld [vmem:[#allocation6 + $0x10] sm:$0xff]
          %v446 = vld [vmem:[#allocation6 + $0x18] sm:$0xff]
          %v447 = vld [vmem:[#allocation6 + $0x20] sm:$0xff]
          %v448 = vld [vmem:[#allocation6 + $0x28] sm:$0xff]
          %v449 = vld [vmem:[#allocation6 + $0x30] sm:$0xff]
          %v450 = vld [vmem:[#allocation6 + $0x38] sm:$0xff]
          %v451 = vld [vmem:[#allocation6 + $0x40] sm:$0xff]
          %v452 = vld [vmem:[#allocation6 + $0x48] sm:$0xff]
          %v453 = vld [vmem:[#allocation6 + $0x50] sm:$0xff]
          %v454 = vld [vmem:[#allocation6 + $0x58] sm:$0xff]
          %v455 = vld [vmem:[#allocation6 + $0x60] sm:$0xff]
          %v456 = vld [vmem:[#allocation6 + $0x68] sm:$0xff]
          %v457 = vld [vmem:[#allocation6 + $0x70] sm:$0xff]
          %v458 = vld [vmem:[#allocation6 + $0x78] sm:$0xff]
          %v459 = vld [vmem:[#allocation6 + $0x80] sm:$0xff]
          %v460 = vld [vmem:[#allocation6 + $0x88] sm:$0xff]
          %v461 = vld [vmem:[#allocation6 + $0x90] sm:$0xff]
          %v462 = vld [vmem:[#allocation6 + $0x98] sm:$0xff]
          %v463 = vld [vmem:[#allocation6 + $0xa0] sm:$0xff]
          %v464 = vld [vmem:[#allocation6 + $0xa8] sm:$0xff]
          %v465 = vld [vmem:[#allocation6 + $0xb0] sm:$0xff]
          %v466 = vld [vmem:[#allocation6 + $0xb8] sm:$0xff]
          %v467 = vld [vmem:[#allocation6 + $0xc0] sm:$0xff]
          %v468 = vld [vmem:[#allocation6 + $0xc8] sm:$0xff]
          %v469 = vld [vmem:[#allocation6 + $0xd0] sm:$0xff]
          %v470 = vld [vmem:[#allocation6 + $0xd8] sm:$0xff]
          %v471 = vld [vmem:[#allocation6 + $0xe0] sm:$0xff]
          %v472 = vld [vmem:[#allocation6 + $0xe8] sm:$0xff]
          %v473 = vld [vmem:[#allocation6 + $0xf0] sm:$0xff]
          %v474 = vld [vmem:[#allocation6 + $0xf8] sm:$0xff]
          %v475 = vld [vmem:[#allocation6 + $0x100] sm:$0xff]
          %v476 = vld [vmem:[#allocation6 + $0x108] sm:$0xff]
          %v477 = vld [vmem:[#allocation6 + $0x110] sm:$0xff]
          %v478 = vld [vmem:[#allocation6 + $0x118] sm:$0xff]
          %v479 = vld [vmem:[#allocation6 + $0x120] sm:$0xff]
          %v480 = vld [vmem:[#allocation6 + $0x128] sm:$0xff]
          %v481 = vld [vmem:[#allocation6 + $0x130] sm:$0xff]
          %v482 = vld [vmem:[#allocation6 + $0x138] sm:$0xff]
          %v483 = vld [vmem:[#allocation6 + $0x140] sm:$0xff]
          %v484 = vld [vmem:[#allocation6 + $0x148] sm:$0xff]
          %v485 = vld [vmem:[#allocation6 + $0x150] sm:$0xff]
          %v486 = vld [vmem:[#allocation6 + $0x158] sm:$0xff]
          %v487 = vld [vmem:[#allocation6 + $0x160] sm:$0xff]
          %v488 = vld [vmem:[#allocation6 + $0x168] sm:$0xff]
          %v489 = vld [vmem:[#allocation6 + $0x170] sm:$0xff]
          %v490 = vld [vmem:[#allocation6 + $0x178] sm:$0xff]
          %v491 = vld [vmem:[#allocation6 + $0x180] sm:$0xff]
          %v492 = vld [vmem:[#allocation6 + $0x188] sm:$0xff]
          %v493 = vld [vmem:[#allocation6 + $0x190] sm:$0xff]
          %v494 = vld [vmem:[#allocation6 + $0x198] sm:$0xff]
          %v495 = vld [vmem:[#allocation6 + $0x1a0] sm:$0xff]
          %v496 = vld [vmem:[#allocation6 + $0x1a8] sm:$0xff]
          %v497 = vld [vmem:[#allocation6 + $0x1b0] sm:$0xff]
          %v498 = vld [vmem:[#allocation6 + $0x1b8] sm:$0xff]
          %v499 = vld [vmem:[#allocation6 + $0x1c0] sm:$0xff]
          %v500 = vld [vmem:[#allocation6 + $0x1c8] sm:$0xff]
          %v501 = vld [vmem:[#allocation6 + $0x1d0] sm:$0xff]
          %v502 = vld [vmem:[#allocation6 + $0x1d8] sm:$0xff]
          %v503 = vld [vmem:[#allocation6 + $0x1e0] sm:$0xff]
          %v504 = vld [vmem:[#allocation6 + $0x1e8] sm:$0xff]
          %v505 = vld [vmem:[#allocation6 + $0x1f0] sm:$0xff]
          %v506 = vld [vmem:[#allocation6 + $0x1f8] sm:$0xff]
          %v507 = vld [vmem:[%s2] sm:$0x3]
          %v509 = vlaneseq
          %v510 = vshrl.u32 %v509, 7
          %v511 = vsub.s32 0, %v510
          %v512 = vrot.slane %v507, %v511
          %v513 = vlaneseq
          %v514 = vshrl.u32 %v513, 7
          %v515 = vsub.s32 1, %v514
          %v516 = vrot.slane %v507, %v515
          %519 = vmatprep.subr.mxu0 %v474
          %520 = vmatpush1.msra.mxu0 %v473
          %521 = vmatprep.subr.mxu0 %v472
          %522 = vmatpush1.msra.mxu0 %v471
          %523 = vmatprep.subr.mxu0 %v470
          %524 = vmatpush1.msra.mxu0 %v469
          %525 = vmatprep.subr.mxu0 %v468
          %526 = vmatpush1.msra.mxu0 %v467
          %527 = vmatprep.subr.mxu0 %v466
          %528 = vmatpush1.msra.mxu0 %v465
          %529 = vmatprep.subr.mxu0 %v464
          %530 = vmatpush1.msra.mxu0 %v463
          %531 = vmatprep.subr.mxu0 %v462
          %532 = vmatpush1.msra.mxu0 %v461
          %533 = vmatprep.subr.mxu0 %v460
          %534 = vmatpush1.msra.mxu0 %v459
          %535 = vmatprep.subr.mxu0 %v458
          %536 = vmatpush1.msra.mxu0 %v457
          %537 = vmatprep.subr.mxu0 %v456
          %538 = vmatpush1.msra.mxu0 %v455
          %539 = vmatprep.subr.mxu0 %v454
          %540 = vmatpush1.msra.mxu0 %v453
          %541 = vmatprep.subr.mxu0 %v452
          %542 = vmatpush1.msra.mxu0 %v451
          %543 = vmatprep.subr.mxu0 %v450
          %544 = vmatpush1.msra.mxu0 %v449
          %545 = vmatprep.subr.mxu0 %v448
          %546 = vmatpush1.msra.mxu0 %v447
          %547 = vmatprep.subr.mxu0 %v446
          %548 = vmatpush1.msra.mxu0 %v445
          %549 = vmatprep.subr.mxu0 %v444
          %550 = vmatpush1.msra.mxu0 %v443
          %551 = vmatprep.subr.mxu0 %v506
          %552 = vmatpush2.msra.mxu0 %v505
          %553 = vmatprep.subr.mxu0 %v504
          %554 = vmatpush2.msra.mxu0 %v503
          %555 = vmatprep.subr.mxu0 %v502
          %556 = vmatpush2.msra.mxu0 %v501
          %557 = vmatprep.subr.mxu0 %v500
          %558 = vmatpush2.msra.mxu0 %v499
          %559 = vmatprep.subr.mxu0 %v498
          %560 = vmatpush2.msra.mxu0 %v497
          %561 = vmatprep.subr.mxu0 %v496
          %562 = vmatpush2.msra.mxu0 %v495
          %563 = vmatprep.subr.mxu0 %v494
          %564 = vmatpush2.msra.mxu0 %v493
          %565 = vmatprep.subr.mxu0 %v492
          %566 = vmatpush2.msra.mxu0 %v491
          %567 = vmatprep.subr.mxu0 %v490
          %568 = vmatpush2.msra.mxu0 %v489
          %569 = vmatprep.subr.mxu0 %v488
          %570 = vmatpush2.msra.mxu0 %v487
          %571 = vmatprep.subr.mxu0 %v486
          %572 = vmatpush2.msra.mxu0 %v485
          %573 = vmatprep.subr.mxu0 %v484
          %574 = vmatpush2.msra.mxu0 %v483
          %575 = vmatprep.subr.mxu0 %v482
          %576 = vmatpush2.msra.mxu0 %v481
          %577 = vmatprep.subr.mxu0 %v480
          %578 = vmatpush2.msra.mxu0 %v479
          %579 = vmatprep.subr.mxu0 %v478
          %580 = vmatpush2.msra.mxu0 %v477
          %581 = vmatprep.subr.mxu0 %v476
          %582 = vmatpush2.msra.mxu0 %v475
          %583 = vmatprep.mubr.f32.mxu0 %v442
          %584 = vmatmul.mubr.f32.gmra.mxu0 %v441
          %v585 = vpop.f32.mrf.mxu0
          %v586 = vadd.f32 %v512, %v585
          %v587 = vpop.f32.mrf.mxu0
          %v588 = vadd.f32 %v516, %v587
          %589 = vdwg.mxu0
          %590 = vst [vmem:[#allocation8] sm:$0xff] %v586
          %591 = vst [vmem:[#allocation8 + $0x8] sm:$0xff] %v588
        $region48: #{tpu_custom_call.1} parent=31 // pred_fallthru
          _
        // Predicated region
        $region49: #{tpu_custom_call.1} parent=31 // pred_check
          %p592 = pneg %p119
        $region50: #{tpu_custom_call.1} parent=31 // pred_check_branch
          %594 = sbr.rel (%p592) target = $region52
        $region51: #{tpu_custom_call.1} parent=31 // pred_region
          %s596 = ssub.s32 256, 256
          %597 = vsyncadd [#allocation5], %s596
          %s598 = smul.addr %s23, 2
          %s599 = smul.addr %s598, 128
          %s600 = scalar_lea.hbm %s3, %s599
          %s602 = sshll.u32 [#allocation8], 4
          %s603 = int_to_ptr.vmem [resolvable:$true] %s602
          %605 = dma.vmem_to_hbm [thread:$0]  %s603, 256, %s600, [#allocation5]
        $region52: #{tpu_custom_call.1} parent=31 // pred_fallthru
          _
        // Predicated region
        $region53: #{tpu_custom_call.1} parent=31 // pred_check
          %p606 = pneg %p119
        $region54: #{tpu_custom_call.1} parent=31 // pred_check_branch
          %608 = sbr.rel (%p606) target = $region56
        $region55: #{tpu_custom_call.1} parent=31 // pred_region
          %609 = dma.done [#allocation5], 256
        $region56: #{tpu_custom_call.1} parent=31 // pred_fallthru
          _
      $region32: #{tpu_custom_call.1} parent=5 // pred_fallthru
        _
      %p610 = scmp.le.s32.totalorder 2, %s14
      // Predicated region
      $region57: #{tpu_custom_call.1} parent=5 // pred_check
        %p611 = pneg %p610
      $region58: #{tpu_custom_call.1} parent=5 // pred_check_branch
        %613 = sbr.rel (%p611) target = $region60
      $region59: #{tpu_custom_call.1} parent=5 // pred_region
        %s614 = ssub.s32 %s14, 2
      $region60: #{tpu_custom_call.1} parent=5 // pred_fallthru
        _
    $region6: #{tpu_custom_call.1} parent=1 // loop_footer
      %s18 = sadd.s32 1, %s14
    $region7: #{tpu_custom_call.1} parent=1 // loop_footer_branch
      %13 = sbr.rel target = $region3
    $region8: #{tpu_custom_call.1} parent=1 // loop_exit
      _
    %615 = vsyncpa [#allocation4], 1
    %s616 = scalar_lea.sflag [#allocation4], 1
    %617 = vsyncpa %s616, 1
    %618 = vsyncpa [#allocation7], 1
    %619 = vsyncpa [#allocation5], 1
    %s620 = scalar_lea.sflag [#allocation5], 1
    %621 = vsyncpa %s620, 1

</llo_original>
